<compile_context>
chip_gen: v6e
topology: v6e:2x2x1
jax: 0.10.0
libtpu: 0.0.40
codegen_flags: <defaults>
</compile_context>

<pallas_src>
import functools
import math

import jax
import jax.numpy as jnp
from jax.experimental import pallas as pl
from jax.experimental.pallas import tpu as pltpu

_LN_EPS = 1e-5


# ----------------------------------------------------------------------------
# Shared in-kernel math
# ----------------------------------------------------------------------------
def _silu(x):
    return x * jax.nn.sigmoid(x)


def _layernorm(y, gamma, beta, eps):
    mu = jnp.mean(y, axis=-1, keepdims=True)
    var = jnp.mean(jnp.square(y - mu), axis=-1, keepdims=True)
    return (y - mu) * jax.lax.rsqrt(var + eps) * gamma + beta


def _pick_tile(n_rows, requested):
    """Cap the row tile so we keep >= 2 grid steps on small inputs (v7x has
    2 TensorCores sharding the parallel grid axis) while never going below a
    single (8, *) sublane tile."""
    half = ((n_rows + 1) // 2 + 7) // 8 * 8
    return max(8, min(requested, half))


_COMPILER_PARAMS = pltpu.CompilerParams(
    dimension_semantics=("parallel",),
    vmem_limit_bytes=32 * 1024 * 1024,
)


# ----------------------------------------------------------------------------
# Node kernel:
#   h_node = LN(SiLU(z @ W1 + b1) @ W2 + b2) + h_time[batch]
# The gather is done in-kernel as one_hot(batch) @ h_time from a resident
# [B, node_dim] VMEM tile (no [N, node_dim] HBM intermediate).
# ----------------------------------------------------------------------------
def _node_kernel(z_ref, batch_ref, htime_ref, w1_ref, b1_ref, w2_ref, b2_ref,
                 g_ref, be_ref, o_ref, *, eps):
    x = z_ref[...].astype(jnp.float32)
    h = jnp.dot(x, w1_ref[...].astype(jnp.float32),
                preferred_element_type=jnp.float32) + b1_ref[...].astype(jnp.float32)
    h = _silu(h)
    y = jnp.dot(h, w2_ref[...].astype(jnp.float32),
                preferred_element_type=jnp.float32) + b2_ref[...].astype(jnp.float32)
    y = _layernorm(y, g_ref[...].astype(jnp.float32),
                   be_ref[...].astype(jnp.float32), eps)

    # fused per-node gather of the per-graph time embedding
    num_graphs = htime_ref.shape[0]
    gid = jax.lax.broadcasted_iota(jnp.int32, (1, num_graphs), 1)   # [1, B]
    sel = (batch_ref[...] == gid).astype(jnp.float32)               # [tile, B]
    y = y + jnp.dot(sel, htime_ref[...].astype(jnp.float32),
                    preferred_element_type=jnp.float32)
    o_ref[...] = y.astype(o_ref.dtype)


def encode_nodes(z, batch, h_time, pp, *, tile=1024, eps=_LN_EPS):
    n, num_species = z.shape
    node_dim = pp["w2"].shape[1]
    num_graphs = h_time.shape[0]
    t = _pick_tile(n, tile)
    grid = (pl.cdiv(n, t),)
    batch2 = batch.reshape(n, 1).astype(jnp.int32)

    return pl.pallas_call(
        functools.partial(_node_kernel, eps=eps),
        out_shape=jax.ShapeDtypeStruct((n, node_dim), z.dtype),
        grid_spec=pltpu.PrefetchScalarGridSpec(
            num_scalar_prefetch=0,
            grid=grid,
            in_specs=[
                pl.BlockSpec((t, num_species), lambda i: (i, 0)),        # z rows
                pl.BlockSpec((t, 1), lambda i: (i, 0)),                  # batch ids
                pl.BlockSpec((num_graphs, node_dim), lambda i: (0, 0)),  # h_time
                pl.BlockSpec((num_species, node_dim), lambda i: (0, 0)),  # W1
                pl.BlockSpec((1, node_dim), lambda i: (0, 0)),           # b1
                pl.BlockSpec((node_dim, node_dim), lambda i: (0, 0)),    # W2
                pl.BlockSpec((1, node_dim), lambda i: (0, 0)),           # b2
                pl.BlockSpec((1, node_dim), lambda i: (0, 0)),           # gamma
                pl.BlockSpec((1, node_dim), lambda i: (0, 0)),           # beta
            ],
            out_specs=pl.BlockSpec((t, node_dim), lambda i: (i, 0)),
        ),
        compiler_params=_COMPILER_PARAMS,
    )(z, batch2, h_time,
      pp["w1"], pp["b1"].reshape(1, -1),
      pp["w2"], pp["b2"].reshape(1, -1),
      pp["gamma"].reshape(1, -1), pp["beta"].reshape(1, -1))


# ----------------------------------------------------------------------------
# Edge kernel:
#   h_edge = LN(SiLU([e, ||e||] @ W1 + b1) @ W2 + b2)
# The norm / concat is done in-kernel by splitting W1 into its first-3 and
# last rows (no [E, 4] HBM intermediate):
#   [e, ||e||] @ W1 == e @ W1[:3] + ||e|| * W1[3]
# ----------------------------------------------------------------------------
def _edge_kernel(e_ref, w1a_ref, w1b_ref, b1_ref, w2_ref, b2_ref,
                 g_ref, be_ref, o_ref, *, eps):
    e = e_ref[...].astype(jnp.float32)                               # [tile, 3]
    nrm = jnp.sqrt(jnp.sum(e * e, axis=-1, keepdims=True))           # [tile, 1]
    h = (jnp.dot(e, w1a_ref[...].astype(jnp.float32),
                 preferred_element_type=jnp.float32)
         + nrm * w1b_ref[...].astype(jnp.float32)
         + b1_ref[...].astype(jnp.float32))
    h = _silu(h)
    y = jnp.dot(h, w2_ref[...].astype(jnp.float32),
                preferred_element_type=jnp.float32) + b2_ref[...].astype(jnp.float32)
    y = _layernorm(y, g_ref[...].astype(jnp.float32),
                   be_ref[...].astype(jnp.float32), eps)
    o_ref[...] = y.astype(o_ref.dtype)


def encode_edges(edge_attr, pp, *, tile=1024, eps=_LN_EPS):
    n, e_in = edge_attr.shape          # e_in == 3
    hid = pp["w1"].shape[1]
    edge_dim = pp["w2"].shape[1]
    t = _pick_tile(n, tile)
    grid = (pl.cdiv(n, t),)
    w1a = pp["w1"][:3]                 # [3, hid]
    w1b = pp["w1"][3:4]                # [1, hid]

    return pl.pallas_call(
        functools.partial(_edge_kernel, eps=eps),
        out_shape=jax.ShapeDtypeStruct((n, edge_dim), edge_attr.dtype),
        grid_spec=pltpu.PrefetchScalarGridSpec(
            num_scalar_prefetch=0,
            grid=grid,
            in_specs=[
                pl.BlockSpec((t, e_in), lambda i: (i, 0)),           # edge_attr rows
                pl.BlockSpec((3, hid), lambda i: (0, 0)),            # W1[:3]
                pl.BlockSpec((1, hid), lambda i: (0, 0)),            # W1[3]
                pl.BlockSpec((1, hid), lambda i: (0, 0)),            # b1
                pl.BlockSpec((hid, edge_dim), lambda i: (0, 0)),     # W2
                pl.BlockSpec((1, edge_dim), lambda i: (0, 0)),       # b2
                pl.BlockSpec((1, edge_dim), lambda i: (0, 0)),       # gamma
                pl.BlockSpec((1, edge_dim), lambda i: (0, 0)),       # beta
            ],
            out_specs=pl.BlockSpec((t, edge_dim), lambda i: (i, 0)),
        ),
        compiler_params=_COMPILER_PARAMS,
    )(edge_attr, w1a, w1b,
      pp["b1"].reshape(1, -1), pp["w2"], pp["b2"].reshape(1, -1),
      pp["gamma"].reshape(1, -1), pp["beta"].reshape(1, -1))


# ----------------------------------------------------------------------------
# Parameter construction (deterministic, synthetic)
# ----------------------------------------------------------------------------
def _linear_params(key, din, dout):
    k1, k2 = jax.random.split(key)
    lim = 1.0 / math.sqrt(din)
    w = jax.random.uniform(k1, (din, dout), jnp.float32, -lim, lim)
    b = jax.random.uniform(k2, (dout,), jnp.float32, -lim, lim)
    return w, b


def _mlp_ln_params(key, din, h, dout):
    k1, k2 = jax.random.split(key)
    w1, b1 = _linear_params(k1, din, h)
    w2, b2 = _linear_params(k2, h, dout)
    return dict(w1=w1, b1=b1, w2=w2, b2=b2,
                gamma=jnp.ones((dout,), jnp.float32),
                beta=jnp.zeros((dout,), jnp.float32))


def init_encoder_dpm_params(key, num_species, node_dim, edge_dim):
    k_node, k_edge, k_time, k_rff = jax.random.split(key, 4)
    return {
        "node": _mlp_ln_params(k_node, num_species, node_dim, node_dim),
        "edge": _mlp_ln_params(k_edge, 3 + 1, edge_dim, edge_dim),
        "time": _mlp_ln_params(k_time, node_dim, node_dim, node_dim),
        # GaussianRandomFourierFeatures(node_dim, input_dim=1): fixed random
        # projection [1, node_dim//2]; output = [sin(2*pi*t*W), cos(2*pi*t*W)]
        "rff_w": jax.random.normal(k_rff, (1, node_dim // 2), jnp.float32),
    }


# ----------------------------------------------------------------------------
# Plain-JAX MLP+LN (used for the tiny [B, node_dim] time embedding and for
# the verification reference).
# ----------------------------------------------------------------------------
def _mlp_ln_jax(x, pp, eps=_LN_EPS):
    h = x @ pp["w1"] + pp["b1"]
    h = h * jax.nn.sigmoid(h)
    y = h @ pp["w2"] + pp["b2"]
    mu = jnp.mean(y, -1, keepdims=True)
    var = jnp.mean((y - mu) ** 2, -1, keepdims=True)
    return (y - mu) / jnp.sqrt(var + eps) * pp["gamma"] + pp["beta"]


# ----------------------------------------------------------------------------
# Encoder_dpm forward
# ----------------------------------------------------------------------------
def encoder_dpm_forward(params, z, edge_attr, batch, t, *, tile=1024):
    """
    z:         [N, num_species] one-hot species           (data.z)
    edge_attr: [E, 3] relative edge vectors               (data.edge_attr)
    batch:     [N] int32 graph index per node             (data.batch)
    t:         [B, 1] diffusion time per graph
    returns (h_node [N, node_dim], h_edge [E, edge_dim])
    """
    p = params

    # time embedding: B ~ handful of rows -> plain JAX (no kernel launch).
    proj = 2.0 * jnp.pi * (t @ p["rff_w"])                       # [B, node_dim//2]
    rff = jnp.concatenate([jnp.sin(proj), jnp.cos(proj)], -1)    # [B, node_dim]
    h_time = _mlp_ln_jax(rff, p["time"])                         # [B, node_dim]

    # node embedding with the h_time[batch] gather-add fused into the kernel.
    h_node = encode_nodes(z, batch, h_time, p["node"], tile=tile)

    # edge embedding with the ||e|| concat fused into the kernel.
    h_edge = encode_edges(edge_attr, p["edge"], tile=tile)

    return h_node, h_edge


def encoder_dpm_ref(params, z, edge_attr, batch, t):
    p = params
    proj = 2.0 * jnp.pi * (t @ p["rff_w"])
    rff = jnp.concatenate([jnp.sin(proj), jnp.cos(proj)], -1)
    h_time = _mlp_ln_jax(rff, p["time"])
    h_node = _mlp_ln_jax(z, p["node"]) + h_time[batch]
    e_norm = jnp.linalg.norm(edge_attr, axis=-1, keepdims=True)
    h_edge = _mlp_ln_jax(jnp.concatenate([edge_attr, e_norm], -1), p["edge"])
    return h_node, h_edge


# ----------------------------------------------------------------------------
if __name__ == "__main__":
    num_species, node_dim, edge_dim = 8, 32, 32
    N, E, B = 64, 128, 2   # nodes, edges, graphs

    key = jax.random.PRNGKey(0)
    k_p, k_z, k_e, k_t = jax.random.split(key, 4)

    params = init_encoder_dpm_params(k_p, num_species, node_dim, edge_dim)

    species = jax.random.randint(k_z, (N,), 0, num_species)
    z = jax.nn.one_hot(species, num_species, dtype=jnp.float32)     # data.z
    edge_attr = jax.random.normal(k_e, (E, 3), jnp.float32)         # data.edge_attr
    batch = jnp.concatenate([jnp.zeros(N // 2, jnp.int32),
                             jnp.ones(N - N // 2, jnp.int32)])      # data.batch
    t = jax.random.uniform(k_t, (B, 1), jnp.float32)                # diffusion time

    h_node, h_edge = jax.block_until_ready(
        encoder_dpm_forward(params, z, edge_attr, batch, t))

    h_node_ref, h_edge_ref = encoder_dpm_ref(params, z, edge_attr, batch, t)
    assert jnp.allclose(h_node, h_node_ref, atol=1e-4, rtol=1e-4), "node mismatch"
    assert jnp.allclose(h_edge, h_edge_ref, atol=1e-4, rtol=1e-4), "edge mismatch"

    print("KERNEL_OK")
</pallas_src>

<mosaic_0001>
module attributes {stable_mosaic.version = 11 : i64} {
  func.func @_node_kernel(%arg0: i32, %arg1: memref<32x8xf32, #tpu.memory_space<vmem>>, %arg2: memref<32x1xi32, #tpu.memory_space<vmem>>, %arg3: memref<2x32xf32, #tpu.memory_space<vmem>>, %arg4: memref<8x32xf32, #tpu.memory_space<vmem>>, %arg5: memref<1x32xf32, #tpu.memory_space<vmem>>, %arg6: memref<32x32xf32, #tpu.memory_space<vmem>>, %arg7: memref<1x32xf32, #tpu.memory_space<vmem>>, %arg8: memref<1x32xf32, #tpu.memory_space<vmem>>, %arg9: memref<1x32xf32, #tpu.memory_space<vmem>>, %arg10: memref<32x32xf32, #tpu.memory_space<vmem>>) attributes {dimension_semantics = [#tpu.dimension_semantics<parallel>], iteration_bounds = array<i64: 2>, scalar_prefetch = 0 : i64, scratch_operands = 0 : i64, tpu.core_type = #tpu.core_type<tc>, window_params = [{transform_indices = @transform_0, window_bounds = array<i64: 32, 8>}, {transform_indices = @transform_1, window_bounds = array<i64: 32, 1>}, {pipeline_mode = #tpu.pipeline_mode<synchronous>, transform_indices = @transform_2, window_bounds = array<i64: 2, 32>}, {pipeline_mode = #tpu.pipeline_mode<synchronous>, transform_indices = @transform_3, window_bounds = array<i64: 8, 32>}, {pipeline_mode = #tpu.pipeline_mode<synchronous>, transform_indices = @transform_4, window_bounds = array<i64: 1, 32>}, {pipeline_mode = #tpu.pipeline_mode<synchronous>, transform_indices = @transform_5, window_bounds = array<i64: 32, 32>}, {pipeline_mode = #tpu.pipeline_mode<synchronous>, transform_indices = @transform_6, window_bounds = array<i64: 1, 32>}, {pipeline_mode = #tpu.pipeline_mode<synchronous>, transform_indices = @transform_7, window_bounds = array<i64: 1, 32>}, {pipeline_mode = #tpu.pipeline_mode<synchronous>, transform_indices = @transform_8, window_bounds = array<i64: 1, 32>}, {transform_indices = @transform_9, window_bounds = array<i64: 32, 32>}]} {
    %c0 = arith.constant 0 : index
    %c0_0 = arith.constant 0 : index
    %0 = vector.load %arg1[%c0, %c0_0] : memref<32x8xf32, #tpu.memory_space<vmem>>, vector<32x8xf32>
    %c0_1 = arith.constant 0 : index
    %c0_2 = arith.constant 0 : index
    %1 = vector.load %arg4[%c0_1, %c0_2] : memref<8x32xf32, #tpu.memory_space<vmem>>, vector<8x32xf32>
    %cst = arith.constant dense<0.000000e+00> : vector<32x32xf32>
    %2 = tpu.matmul %0, %1, %cst {dimension_numbers = #tpu.dot_dimension_numbers<[1], [0], [0], [1], [0, 0, 1, 1], [], []>} : vector<32x8xf32>, vector<8x32xf32>, vector<32x32xf32> -> vector<32x32xf32>
    %c0_3 = arith.constant 0 : index
    %c0_4 = arith.constant 0 : index
    %3 = vector.load %arg5[%c0_3, %c0_4] : memref<1x32xf32, #tpu.memory_space<vmem>>, vector<1x32xf32>
    %4 = vector.broadcast %3 : vector<1x32xf32> to vector<32x32xf32>
    %5 = arith.addf %2, %4 : vector<32x32xf32>
    %6 = arith.negf %5 : vector<32x32xf32>
    %7 = math.exp %6 : vector<32x32xf32>
    %cst_5 = arith.constant 1.000000e+00 : f32
    %8 = vector.broadcast %cst_5 : f32 to vector<32x32xf32>
    %9 = arith.addf %8, %7 : vector<32x32xf32>
    %10 = arith.divf %8, %9 : vector<32x32xf32>
    %11 = arith.mulf %5, %10 : vector<32x32xf32>
    %c0_6 = arith.constant 0 : index
    %c0_7 = arith.constant 0 : index
    %12 = vector.load %arg6[%c0_6, %c0_7] : memref<32x32xf32, #tpu.memory_space<vmem>>, vector<32x32xf32>
    %cst_8 = arith.constant dense<0.000000e+00> : vector<32x32xf32>
    %13 = tpu.matmul %11, %12, %cst_8 {dimension_numbers = #tpu.dot_dimension_numbers<[1], [0], [0], [1], [0, 0, 1, 1], [], []>} : vector<32x32xf32>, vector<32x32xf32>, vector<32x32xf32> -> vector<32x32xf32>
    %c0_9 = arith.constant 0 : index
    %c0_10 = arith.constant 0 : index
    %14 = vector.load %arg7[%c0_9, %c0_10] : memref<1x32xf32, #tpu.memory_space<vmem>>, vector<1x32xf32>
    %15 = vector.broadcast %14 : vector<1x32xf32> to vector<32x32xf32>
    %16 = arith.addf %13, %15 : vector<32x32xf32>
    %c0_11 = arith.constant 0 : index
    %c0_12 = arith.constant 0 : index
    %17 = vector.load %arg8[%c0_11, %c0_12] : memref<1x32xf32, #tpu.memory_space<vmem>>, vector<1x32xf32>
    %c0_13 = arith.constant 0 : index
    %c0_14 = arith.constant 0 : index
    %18 = vector.load %arg9[%c0_13, %c0_14] : memref<1x32xf32, #tpu.memory_space<vmem>>, vector<1x32xf32>
    %cst_15 = arith.constant dense<0.000000e+00> : vector<32xf32>
    %19 = vector.multi_reduction <add>, %16, %cst_15 [1] : vector<32x32xf32> to vector<32xf32>
    %20 = vector.shape_cast %19 : vector<32xf32> to vector<32x1xf32>
    %cst_16 = arith.constant 3.200000e+01 : f32
    %21 = vector.broadcast %cst_16 : f32 to vector<32x1xf32>
    %22 = arith.divf %20, %21 : vector<32x1xf32>
    %23 = vector.broadcast %22 : vector<32x1xf32> to vector<32x32xf32>
    %24 = arith.subf %16, %23 : vector<32x32xf32>
    %25 = arith.mulf %24, %24 : vector<32x32xf32>
    %cst_17 = arith.constant dense<0.000000e+00> : vector<32xf32>
    %26 = vector.multi_reduction <add>, %25, %cst_17 [1] : vector<32x32xf32> to vector<32xf32>
    %27 = vector.shape_cast %26 : vector<32xf32> to vector<32x1xf32>
    %cst_18 = arith.constant 3.200000e+01 : f32
    %28 = vector.broadcast %cst_18 : f32 to vector<32x1xf32>
    %29 = arith.divf %27, %28 : vector<32x1xf32>
    %30 = vector.broadcast %22 : vector<32x1xf32> to vector<32x32xf32>
    %31 = arith.subf %16, %30 : vector<32x32xf32>
    %cst_19 = arith.constant 9.99999974E-6 : f32
    %32 = vector.broadcast %cst_19 : f32 to vector<32x1xf32>
    %33 = arith.addf %29, %32 : vector<32x1xf32>
    %34 = math.rsqrt %33 : vector<32x1xf32>
    %35 = vector.broadcast %34 : vector<32x1xf32> to vector<32x32xf32>
    %36 = arith.mulf %31, %35 : vector<32x32xf32>
    %37 = vector.broadcast %17 : vector<1x32xf32> to vector<32x32xf32>
    %38 = arith.mulf %36, %37 : vector<32x32xf32>
    %39 = vector.broadcast %18 : vector<1x32xf32> to vector<32x32xf32>
    %40 = arith.addf %38, %39 : vector<32x32xf32>
    %41 = tpu.iota {dimensions = array<i32: 1>} : vector<1x2xi32>
    %c0_20 = arith.constant 0 : index
    %c0_21 = arith.constant 0 : index
    %42 = vector.load %arg2[%c0_20, %c0_21] : memref<32x1xi32, #tpu.memory_space<vmem>>, vector<32x1xi32>
    %43 = vector.broadcast %42 : vector<32x1xi32> to vector<32x2xi32>
    %44 = vector.broadcast %41 : vector<1x2xi32> to vector<32x2xi32>
    %45 = arith.cmpi eq, %43, %44 : vector<32x2xi32>
    %46 = arith.extui %45 : vector<32x2xi1> to vector<32x2xi32>
    %47 = arith.sitofp %46 : vector<32x2xi32> to vector<32x2xf32>
    %c0_22 = arith.constant 0 : index
    %c0_23 = arith.constant 0 : index
    %48 = vector.load %arg3[%c0_22, %c0_23] : memref<2x32xf32, #tpu.memory_space<vmem>>, vector<2x32xf32>
    %cst_24 = arith.constant dense<0.000000e+00> : vector<32x32xf32>
    %49 = tpu.matmul %47, %48, %cst_24 {dimension_numbers = #tpu.dot_dimension_numbers<[1], [0], [0], [1], [0, 0, 1, 1], [], []>} : vector<32x2xf32>, vector<2x32xf32>, vector<32x32xf32> -> vector<32x32xf32>
    %50 = arith.addf %40, %49 : vector<32x32xf32>
    %c0_25 = arith.constant 0 : index
    %c0_26 = arith.constant 0 : index
    %51 = vector.load %arg10[%c0_25, %c0_26] : memref<32x32xf32, #tpu.memory_space<vmem>>, vector<32x32xf32>
    tpu.vector_store %arg10[%c0_25, %c0_26], %50 {strides = array<i32>} : memref<32x32xf32, #tpu.memory_space<vmem>>, vector<32x32xf32>,
    return
  }
  func.func @transform_0(%arg0: i32) -> (i32, i32) {
    %c0_i32 = arith.constant 0 : i32
    %c0_i32_0 = arith.constant 0 : i32
    return %arg0, %c0_i32 : i32, i32
  }
  func.func @transform_1(%arg0: i32) -> (i32, i32) {
    %c0_i32 = arith.constant 0 : i32
    %c0_i32_0 = arith.constant 0 : i32
    return %arg0, %c0_i32 : i32, i32
  }
  func.func @transform_2(%arg0: i32) -> (i32, i32) {
    %c0_i32 = arith.constant 0 : i32
    %c0_i32_0 = arith.constant 0 : i32
    %c0_i32_1 = arith.constant 0 : i32
    return %c0_i32, %c0_i32_0 : i32, i32
  }
  func.func @transform_3(%arg0: i32) -> (i32, i32) {
    %c0_i32 = arith.constant 0 : i32
    %c0_i32_0 = arith.constant 0 : i32
    %c0_i32_1 = arith.constant 0 : i32
    return %c0_i32, %c0_i32_0 : i32, i32
  }
  func.func @transform_4(%arg0: i32) -> (i32, i32) {
    %c0_i32 = arith.constant 0 : i32
    %c0_i32_0 = arith.constant 0 : i32
    %c0_i32_1 = arith.constant 0 : i32
    return %c0_i32, %c0_i32_0 : i32, i32
  }
  func.func @transform_5(%arg0: i32) -> (i32, i32) {
    %c0_i32 = arith.constant 0 : i32
    %c0_i32_0 = arith.constant 0 : i32
    %c0_i32_1 = arith.constant 0 : i32
    return %c0_i32, %c0_i32_0 : i32, i32
  }
  func.func @transform_6(%arg0: i32) -> (i32, i32) {
    %c0_i32 = arith.constant 0 : i32
    %c0_i32_0 = arith.constant 0 : i32
    %c0_i32_1 = arith.constant 0 : i32
    return %c0_i32, %c0_i32_0 : i32, i32
  }
  func.func @transform_7(%arg0: i32) -> (i32, i32) {
    %c0_i32 = arith.constant 0 : i32
    %c0_i32_0 = arith.constant 0 : i32
    %c0_i32_1 = arith.constant 0 : i32
    return %c0_i32, %c0_i32_0 : i32, i32
  }
  func.func @transform_8(%arg0: i32) -> (i32, i32) {
    %c0_i32 = arith.constant 0 : i32
    %c0_i32_0 = arith.constant 0 : i32
    %c0_i32_1 = arith.constant 0 : i32
    return %c0_i32, %c0_i32_0 : i32, i32
  }
  func.func @transform_9(%arg0: i32) -> (i32, i32) {
    %c0_i32 = arith.constant 0 : i32
    %c0_i32_0 = arith.constant 0 : i32
    return %arg0, %c0_i32 : i32, i32
  }
}

</mosaic_0001>

<llo_original>
// kernel: tpu_custom_call.1
$region0: #{tpu_custom_call.1}
  #allocation0 [shape = 'u32[]', space=smem, size = 0x4, offset = 0x4, fixed_abs, tag = 'smem constant byte address 0x4 - core index']
  #allocation1 [shape = 'u32[144,128]{1,0:T(1,128)}', space=vmem, size = 0x12000, scoped, tag = 'internal scratch']
  %s0 = inlined_call_operand.vmem [shape: f32[64,8], index: 0, kind: input, shape index: {}]
  %s1 = inlined_call_operand.vmem [shape: s32[64,1], index: 1, kind: input, shape index: {}]
  %s2 = inlined_call_operand.vmem [shape: f32[2,32], index: 2, kind: input, shape index: {}]
  %s3 = inlined_call_operand.vmem [shape: f32[8,32], index: 3, kind: input, shape index: {}]
  %s4 = inlined_call_operand.vmem [shape: f32[1,32], index: 4, kind: input, shape index: {}]
  %s5 = inlined_call_operand.vmem [shape: f32[32,32], index: 5, kind: input, shape index: {}]
  %s6 = inlined_call_operand.vmem [shape: f32[1,32], index: 6, kind: input, shape index: {}]
  %s7 = inlined_call_operand.vmem [shape: f32[1,32], index: 7, kind: input, shape index: {}]
  %s8 = inlined_call_operand.vmem [shape: f32[1,32], index: 8, kind: input, shape index: {}]
  %s9 = inlined_call_operand.vmem [shape: f32[64,32], index: 9, kind: output, shape index: {}]
  %s10 = sld [smem:[#allocation0]]
  $region69: #{tpu_custom_call.1} parent=0
    _
  %s12 = ssub.s32 1, %s10
  %s13 = scalar_select 0, %s12, %s10
  loop: start=0, step=1, limit=4
  $region2: #{tpu_custom_call.1} parent=0 // loop_pre_header
    _
  $region3: #{tpu_custom_call.1} parent=0 // loop_header
    %s15 = sphi 0, %s19
    %p16 = scmp.ge.s32.totalorder %s15, 4
    %s25 = sphi 0, %s27
    %s28 = sphi 0, %s25
    %s29 = sphi 0, %s28
    %s45 = sphi 0, %s29
    %s51 = sphi 0, %s53
    %s54 = sphi 0, %s51
    %s55 = sphi 0, %s54
    %s71 = sphi 0, %s55
    %s75 = sphi 0, %s75
    %s77 = sphi 0, %s75
    %s78 = sphi 0, %s77
    %s92 = sphi 0, %s78
    %s96 = sphi 0, %s96
    %s98 = sphi 0, %s96
    %s99 = sphi 0, %s98
    %s113 = sphi 0, %s99
    %s117 = sphi 0, %s117
    %s119 = sphi 0, %s117
    %s120 = sphi 0, %s119
    %s134 = sphi 0, %s120
    %s138 = sphi 0, %s138
    %s140 = sphi 0, %s138
    %s141 = sphi 0, %s140
    %s155 = sphi 0, %s141
    %s159 = sphi 0, %s159
    %s161 = sphi 0, %s159
    %s162 = sphi 0, %s161
    %s176 = sphi 0, %s162
    %s180 = sphi 0, %s180
    %s182 = sphi 0, %s180
    %s183 = sphi 0, %s182
    %s197 = sphi 0, %s183
    %s201 = sphi 0, %s201
    %s203 = sphi 0, %s201
    %s204 = sphi 0, %s203
    %s218 = sphi 0, %s204
    %s224 = sphi 0, %s226
    %s227 = sphi 0, %s224
    %s228 = sphi 0, %s227
    %s244 = sphi 0, %s228
  $region4: #{tpu_custom_call.1} parent=0 // loop_header_branch
    %18 = sbr.rel (%p16) target = $region8
  $region5: #{tpu_custom_call.1} parent=0 // loop_body
    %s20 = ssub.s32 %s15, 1
    %s21 = ssub.s32 %s15, 2
    %s22 = sadd.s32 %s15, 1
    %s23 = ssub.s32 %s15, %s22
    %p24 = scmp.eq.s32.totalorder %s23, 0
    %s26 = sadd.s32 %s25, 1
    %s27 = scalar_select %p24, %s25, %s26
    %p30 = pneg %p24
    %p31 = scmp.eq.s32.totalorder %s15, 1
    %p32 = por %p30, %p31
    %p33 = scmp.ne.s32.totalorder %s25, %s28
    %p34 = scmp.eq.s32.totalorder %s15, 0
    %p35 = por %p33, %p34
    %p36 = scmp.ne.s32.totalorder %s25, %s28
    %p37 = scmp.eq.s32.totalorder %s20, 1
    %p38 = por %p36, %p37
    %p39 = scmp.ne.s32.totalorder %s28, %s29
    %p40 = scmp.eq.s32.totalorder %s20, 0
    %p41 = por %p39, %p40
    %p42 = scmp.ne.s32.totalorder %s28, %s29
    %p43 = scmp.eq.s32.totalorder %s21, 1
    %p44 = por %p42, %p43
    %p46 = scmp.ne.s32.totalorder %s29, %s45
    %p47 = scmp.eq.s32.totalorder %s21, 0
    %p48 = por %p46, %p47
    %s49 = ssub.s32 %s15, %s22
    %p50 = scmp.eq.s32.totalorder %s49, 0
    %s52 = sadd.s32 %s51, 1
    %s53 = scalar_select %p50, %s51, %s52
    %p56 = pneg %p50
    %p57 = scmp.eq.s32.totalorder %s15, 1
    %p58 = por %p56, %p57
    %p59 = scmp.ne.s32.totalorder %s51, %s54
    %p60 = scmp.eq.s32.totalorder %s15, 0
    %p61 = por %p59, %p60
    %p62 = scmp.ne.s32.totalorder %s51, %s54
    %p63 = scmp.eq.s32.totalorder %s20, 1
    %p64 = por %p62, %p63
    %p65 = scmp.ne.s32.totalorder %s54, %s55
    %p66 = scmp.eq.s32.totalorder %s20, 0
    %p67 = por %p65, %p66
    %p68 = scmp.ne.s32.totalorder %s54, %s55
    %p69 = scmp.eq.s32.totalorder %s21, 1
    %p70 = por %p68, %p69
    %p72 = scmp.ne.s32.totalorder %s55, %s71
    %p73 = scmp.eq.s32.totalorder %s21, 0
    %p74 = por %p72, %p73
    %s76 = sadd.s32 %s75, 1
    %p79 = scmp.eq.s32.totalorder %s15, 1
    %p80 = scmp.ne.s32.totalorder %s75, %s77
    %p81 = scmp.eq.s32.totalorder %s15, 0
    %p82 = por %p80, %p81
    %p83 = scmp.ne.s32.totalorder %s75, %s77
    %p84 = scmp.eq.s32.totalorder %s20, 1
    %p85 = por %p83, %p84
    %p86 = scmp.ne.s32.totalorder %s77, %s78
    %p87 = scmp.eq.s32.totalorder %s20, 0
    %p88 = por %p86, %p87
    %p89 = scmp.ne.s32.totalorder %s77, %s78
    %p90 = scmp.eq.s32.totalorder %s21, 1
    %p91 = por %p89, %p90
    %p93 = scmp.ne.s32.totalorder %s78, %s92
    %p94 = scmp.eq.s32.totalorder %s21, 0
    %p95 = por %p93, %p94
    %s97 = sadd.s32 %s96, 1
    %p100 = scmp.eq.s32.totalorder %s15, 1
    %p101 = scmp.ne.s32.totalorder %s96, %s98
    %p102 = scmp.eq.s32.totalorder %s15, 0
    %p103 = por %p101, %p102
    %p104 = scmp.ne.s32.totalorder %s96, %s98
    %p105 = scmp.eq.s32.totalorder %s20, 1
    %p106 = por %p104, %p105
    %p107 = scmp.ne.s32.totalorder %s98, %s99
    %p108 = scmp.eq.s32.totalorder %s20, 0
    %p109 = por %p107, %p108
    %p110 = scmp.ne.s32.totalorder %s98, %s99
    %p111 = scmp.eq.s32.totalorder %s21, 1
    %p112 = por %p110, %p111
    %p114 = scmp.ne.s32.totalorder %s99, %s113
    %p115 = scmp.eq.s32.totalorder %s21, 0
    %p116 = por %p114, %p115
    %s118 = sadd.s32 %s117, 1
    %p121 = scmp.eq.s32.totalorder %s15, 1
    %p122 = scmp.ne.s32.totalorder %s117, %s119
    %p123 = scmp.eq.s32.totalorder %s15, 0
    %p124 = por %p122, %p123
    %p125 = scmp.ne.s32.totalorder %s117, %s119
    %p126 = scmp.eq.s32.totalorder %s20, 1
    %p127 = por %p125, %p126
    %p128 = scmp.ne.s32.totalorder %s119, %s120
    %p129 = scmp.eq.s32.totalorder %s20, 0
    %p130 = por %p128, %p129
    %p131 = scmp.ne.s32.totalorder %s119, %s120
    %p132 = scmp.eq.s32.totalorder %s21, 1
    %p133 = por %p131, %p132
    %p135 = scmp.ne.s32.totalorder %s120, %s134
    %p136 = scmp.eq.s32.totalorder %s21, 0
    %p137 = por %p135, %p136
    %s139 = sadd.s32 %s138, 1
    %p142 = scmp.eq.s32.totalorder %s15, 1
    %p143 = scmp.ne.s32.totalorder %s138, %s140
    %p144 = scmp.eq.s32.totalorder %s15, 0
    %p145 = por %p143, %p144
    %p146 = scmp.ne.s32.totalorder %s138, %s140
    %p147 = scmp.eq.s32.totalorder %s20, 1
    %p148 = por %p146, %p147
    %p149 = scmp.ne.s32.totalorder %s140, %s141
    %p150 = scmp.eq.s32.totalorder %s20, 0
    %p151 = por %p149, %p150
    %p152 = scmp.ne.s32.totalorder %s140, %s141
    %p153 = scmp.eq.s32.totalorder %s21, 1
    %p154 = por %p152, %p153
    %p156 = scmp.ne.s32.totalorder %s141, %s155
    %p157 = scmp.eq.s32.totalorder %s21, 0
    %p158 = por %p156, %p157
    %s160 = sadd.s32 %s159, 1
    %p163 = scmp.eq.s32.totalorder %s15, 1
    %p164 = scmp.ne.s32.totalorder %s159, %s161
    %p165 = scmp.eq.s32.totalorder %s15, 0
    %p166 = por %p164, %p165
    %p167 = scmp.ne.s32.totalorder %s159, %s161
    %p168 = scmp.eq.s32.totalorder %s20, 1
    %p169 = por %p167, %p168
    %p170 = scmp.ne.s32.totalorder %s161, %s162
    %p171 = scmp.eq.s32.totalorder %s20, 0
    %p172 = por %p170, %p171
    %p173 = scmp.ne.s32.totalorder %s161, %s162
    %p174 = scmp.eq.s32.totalorder %s21, 1
    %p175 = por %p173, %p174
    %p177 = scmp.ne.s32.totalorder %s162, %s176
    %p178 = scmp.eq.s32.totalorder %s21, 0
    %p179 = por %p177, %p178
    %s181 = sadd.s32 %s180, 1
    %p184 = scmp.eq.s32.totalorder %s15, 1
    %p185 = scmp.ne.s32.totalorder %s180, %s182
    %p186 = scmp.eq.s32.totalorder %s15, 0
    %p187 = por %p185, %p186
    %p188 = scmp.ne.s32.totalorder %s180, %s182
    %p189 = scmp.eq.s32.totalorder %s20, 1
    %p190 = por %p188, %p189
    %p191 = scmp.ne.s32.totalorder %s182, %s183
    %p192 = scmp.eq.s32.totalorder %s20, 0
    %p193 = por %p191, %p192
    %p194 = scmp.ne.s32.totalorder %s182, %s183
    %p195 = scmp.eq.s32.totalorder %s21, 1
    %p196 = por %p194, %p195
    %p198 = scmp.ne.s32.totalorder %s183, %s197
    %p199 = scmp.eq.s32.totalorder %s21, 0
    %p200 = por %p198, %p199
    %s202 = sadd.s32 %s201, 1
    %p205 = scmp.eq.s32.totalorder %s15, 1
    %p206 = scmp.ne.s32.totalorder %s201, %s203
    %p207 = scmp.eq.s32.totalorder %s15, 0
    %p208 = por %p206, %p207
    %p209 = scmp.ne.s32.totalorder %s201, %s203
    %p210 = scmp.eq.s32.totalorder %s20, 1
    %p211 = por %p209, %p210
    %p212 = scmp.ne.s32.totalorder %s203, %s204
    %p213 = scmp.eq.s32.totalorder %s20, 0
    %p214 = por %p212, %p213
    %p215 = scmp.ne.s32.totalorder %s203, %s204
    %p216 = scmp.eq.s32.totalorder %s21, 1
    %p217 = por %p215, %p216
    %p219 = scmp.ne.s32.totalorder %s204, %s218
    %p220 = scmp.eq.s32.totalorder %s21, 0
    %p221 = por %p219, %p220
    %s222 = ssub.s32 %s15, %s22
    %p223 = scmp.eq.s32.totalorder %s222, 0
    %s225 = sadd.s32 %s224, 1
    %s226 = scalar_select %p223, %s224, %s225
    %p229 = pneg %p223
    %p230 = scmp.eq.s32.totalorder %s15, 1
    %p231 = por %p229, %p230
    %p232 = scmp.ne.s32.totalorder %s224, %s227
    %p233 = scmp.eq.s32.totalorder %s15, 0
    %p234 = por %p232, %p233
    %p235 = scmp.ne.s32.totalorder %s224, %s227
    %p236 = scmp.eq.s32.totalorder %s20, 1
    %p237 = por %p235, %p236
    %p238 = scmp.ne.s32.totalorder %s227, %s228
    %p239 = scmp.eq.s32.totalorder %s20, 0
    %p240 = por %p238, %p239
    %p241 = scmp.ne.s32.totalorder %s227, %s228
    %p242 = scmp.eq.s32.totalorder %s21, 1
    %p243 = por %p241, %p242
    %p245 = scmp.ne.s32.totalorder %s228, %s244
    %p246 = scmp.eq.s32.totalorder %s21, 0
    %p247 = por %p245, %p246
    %p248 = scmp.le.s32.totalorder 1, %s15
    %p249 = scmp.lt.s32.totalorder %s15, 3
    %p250 = pnand %p248, %p249
    %p251 = pneg %p250
    // Predicated region
    $region9: #{tpu_custom_call.1} parent=5 // pred_check
      _
    $region10: #{tpu_custom_call.1} parent=5 // pred_check_branch
      %253 = sbr.rel (%p250) target = $region12
    $region11: #{tpu_custom_call.1} parent=5 // pred_region
      %s254 = ssub.s32 %s15, 1
      // Predicated region
      $region13: #{tpu_custom_call.1} parent=11 // pred_check
        %p255 = pneg %p88
      $region14: #{tpu_custom_call.1} parent=11 // pred_check_branch
        %257 = sbr.rel (%p255) target = $region16
      $region15: #{tpu_custom_call.1} parent=11 // pred_region
        _
      $region16: #{tpu_custom_call.1} parent=11 // pred_fallthru
        _
      // Predicated region
      $region17: #{tpu_custom_call.1} parent=11 // pred_check
        %p258 = pneg %p109
      $region18: #{tpu_custom_call.1} parent=11 // pred_check_branch
        %260 = sbr.rel (%p258) target = $region20
      $region19: #{tpu_custom_call.1} parent=11 // pred_region
        _
      $region20: #{tpu_custom_call.1} parent=11 // pred_fallthru
        _
      // Predicated region
      $region21: #{tpu_custom_call.1} parent=11 // pred_check
        %p261 = pneg %p130
      $region22: #{tpu_custom_call.1} parent=11 // pred_check_branch
        %263 = sbr.rel (%p261) target = $region24
      $region23: #{tpu_custom_call.1} parent=11 // pred_region
        _
      $region24: #{tpu_custom_call.1} parent=11 // pred_fallthru
        _
      // Predicated region
      $region25: #{tpu_custom_call.1} parent=11 // pred_check
        %p264 = pneg %p151
      $region26: #{tpu_custom_call.1} parent=11 // pred_check_branch
        %266 = sbr.rel (%p264) target = $region28
      $region27: #{tpu_custom_call.1} parent=11 // pred_region
        _
      $region28: #{tpu_custom_call.1} parent=11 // pred_fallthru
        _
      // Predicated region
      $region29: #{tpu_custom_call.1} parent=11 // pred_check
        %p267 = pneg %p172
      $region30: #{tpu_custom_call.1} parent=11 // pred_check_branch
        %269 = sbr.rel (%p267) target = $region32
      $region31: #{tpu_custom_call.1} parent=11 // pred_region
        _
      $region32: #{tpu_custom_call.1} parent=11 // pred_fallthru
        _
      // Predicated region
      $region33: #{tpu_custom_call.1} parent=11 // pred_check
        %p270 = pneg %p193
      $region34: #{tpu_custom_call.1} parent=11 // pred_check_branch
        %272 = sbr.rel (%p270) target = $region36
      $region35: #{tpu_custom_call.1} parent=11 // pred_region
        _
      $region36: #{tpu_custom_call.1} parent=11 // pred_fallthru
        _
      // Predicated region
      $region37: #{tpu_custom_call.1} parent=11 // pred_check
        %p273 = pneg %p214
      $region38: #{tpu_custom_call.1} parent=11 // pred_check_branch
        %275 = sbr.rel (%p273) target = $region40
      $region39: #{tpu_custom_call.1} parent=11 // pred_region
        _
      $region40: #{tpu_custom_call.1} parent=11 // pred_fallthru
        _
    $region12: #{tpu_custom_call.1} parent=5 // pred_fallthru
      _
    %p276 = scmp.lt.s32.totalorder %s15, 2
    // Predicated region
    $region41: #{tpu_custom_call.1} parent=5 // pred_check
      %p277 = pneg %p276
    $region42: #{tpu_custom_call.1} parent=5 // pred_check_branch
      %279 = sbr.rel (%p277) target = $region44
    $region43: #{tpu_custom_call.1} parent=5 // pred_region
      // Predicated region
      $region45: #{tpu_custom_call.1} parent=43 // pred_check
        %p280 = pneg %p35
      $region46: #{tpu_custom_call.1} parent=43 // pred_check_branch
        %282 = sbr.rel (%p280) target = $region48
      $region47: #{tpu_custom_call.1} parent=43 // pred_region
        %s283 = smul.u32 4, %s15
        %p284 = scmp.lt.s32.totalorder %s283, 7
        %s285 = scalar_select %p284, %s283, 7
        %s286 = smul.addr %s285, 8
        %s287 = scalar_lea.vmem %s0, %s286
        %s288 = smul.u32 4, %s15
      $region48: #{tpu_custom_call.1} parent=43 // pred_fallthru
        _
      // Predicated region
      $region49: #{tpu_custom_call.1} parent=43 // pred_check
        %p289 = pneg %p61
      $region50: #{tpu_custom_call.1} parent=43 // pred_check_branch
        %291 = sbr.rel (%p289) target = $region52
      $region51: #{tpu_custom_call.1} parent=43 // pred_region
        %s292 = smul.u32 4, %s15
        %p293 = scmp.lt.s32.totalorder %s292, 7
        %s294 = scalar_select %p293, %s292, 7
        %s295 = smul.addr %s294, 8
        %s296 = scalar_lea.vmem %s1, %s295
        %s297 = smul.u32 4, %s15
      $region52: #{tpu_custom_call.1} parent=43 // pred_fallthru
        _
    $region44: #{tpu_custom_call.1} parent=5 // pred_fallthru
      _
    %p298 = scmp.le.s32.totalorder 1, %s15
    %p299 = scmp.lt.s32.totalorder %s15, 3
    %p300 = pnand %p298, %p299
    %p301 = pneg %p300
    // Predicated region
    $region53: #{tpu_custom_call.1} parent=5 // pred_check
      _
    $region54: #{tpu_custom_call.1} parent=5 // pred_check_branch
      %303 = sbr.rel (%p300) target = $region56
    $region55: #{tpu_custom_call.1} parent=5 // pred_region
      %s304 = ssub.s32 %s15, 1
      %s305 = smul.u32 4, %s20
      %p306 = scmp.lt.s32.totalorder %s305, 7
      %s307 = scalar_select %p306, %s305, 7
      %s308 = smul.addr %s307, 8
      %s309 = scalar_lea.vmem %s0, %s308
      %p310 = pneg %p41
      %p311 = pneg %p38
      %s312 = smul.u32 4, %s20
      %p313 = scmp.lt.s32.totalorder %s312, 7
      %s314 = scalar_select %p313, %s312, 7
      %s315 = smul.addr %s314, 8
      %s316 = scalar_lea.vmem %s1, %s315
      %p317 = pneg %p67
      %p318 = pneg %p64
      %p319 = pneg %p88
      %p320 = pneg %p85
      %p321 = pneg %p109
      %p322 = pneg %p106
      %p323 = pneg %p130
      %p324 = pneg %p127
      %p325 = pneg %p151
      %p326 = pneg %p148
      %p327 = pneg %p172
      %p328 = pneg %p169
      %p329 = pneg %p193
      %p330 = pneg %p190
      %p331 = pneg %p214
      %p332 = pneg %p211
      %p333 = pneg %p240
      %p334 = pneg %p237
      %s335 = smul.u32 4, %s20
      %p336 = scmp.lt.s32.totalorder %s335, 7
      %s337 = scalar_select %p336, %s335, 7
      %s338 = smul.addr %s337, 8
      %s339 = scalar_lea.vmem %s9, %s338
      %s340 = smul.u32 4, %s20
      %p341 = scmp.lt.s32.totalorder %s340, 7
      %s342 = scalar_select %p341, %s340, 7
      %s343 = smul.addr %s342, 8
      %s344 = scalar_lea.vmem %s0, %s343
      %s345 = smul.u32 4, %s20
      %s346 = smul.u32 4, %s20
      %p347 = scmp.lt.s32.totalorder %s346, 7
      %s348 = scalar_select %p347, %s346, 7
      %s349 = smul.addr %s348, 8
      %s350 = scalar_lea.vmem %s1, %s349
      %s351 = smul.u32 4, %s20
      %s352 = smul.u32 4, %s20
      %p353 = scmp.lt.s32.totalorder %s352, 7
      %s354 = scalar_select %p353, %s352, 7
      %s355 = smul.addr %s354, 8
      %s356 = scalar_lea.vmem %s9, %s355
      %s357 = smul.u32 4, %s20
      %v358 = vld [vmem:[%s344] sm:$0xff]
      %v359 = vld [vmem:[%s344 + $0x8] sm:$0xff]
      %v360 = vld [vmem:[%s344 + $0x10] sm:$0xff]
      %v361 = vld [vmem:[%s344 + $0x18] sm:$0xff]
      %v362 = vld [vmem:[%s3] sm:$0xff]
      %v363 = vld [vmem:[%s4] sm:$0x1]
      %v365 = vlaneseq
      %v366 = vshrl.u32 %v365, 7
      %v367 = vsub.s32 0, %v366
      %v368 = vrot.slane %v363, %v367
      %vm370 = vcmask 64512
      %v372 = vsel %vm370, %v358, 0
      %v375 = vsel %vm370, %v359, 0
      %v378 = vsel %vm370, %v360, 0
      %v381 = vsel %vm370, %v361, 0
      %383 = vmatprep.subr.mxu0 0.0
      %384 = vmatpush1.msra.mxu0 0.0
      %385 = vmatprep.subr.mxu0 0.0
      %386 = vmatpush1.msra.mxu0 0.0
      %387 = vmatprep.subr.mxu0 0.0
      %388 = vmatpush1.msra.mxu0 0.0
      %389 = vmatprep.subr.mxu0 0.0
      %390 = vmatpush1.msra.mxu0 0.0
      %391 = vmatprep.subr.mxu0 0.0
      %392 = vmatpush1.msra.mxu0 0.0
      %393 = vmatprep.subr.mxu0 0.0
      %394 = vmatpush1.msra.mxu0 0.0
      %395 = vmatprep.subr.mxu0 0.0
      %396 = vmatpush1.msra.mxu0 0.0
      %397 = vmatprep.subr.mxu0 0.0
      %398 = vmatpush1.msra.mxu0 0.0
      %399 = vmatprep.subr.mxu0 0.0
      %400 = vmatpush1.msra.mxu0 0.0
      %401 = vmatprep.subr.mxu0 0.0
      %402 = vmatpush1.msra.mxu0 0.0
      %403 = vmatprep.subr.mxu0 0.0
      %404 = vmatpush1.msra.mxu0 0.0
      %405 = vmatprep.subr.mxu0 0.0
      %406 = vmatpush1.msra.mxu0 0.0
      %407 = vmatprep.subr.mxu0 0.0
      %408 = vmatpush1.msra.mxu0 0.0
      %409 = vmatprep.subr.mxu0 0.0
      %410 = vmatpush1.msra.mxu0 0.0
      %411 = vmatprep.subr.mxu0 0.0
      %412 = vmatpush1.msra.mxu0 0.0
      %413 = vmatprep.subr.mxu0 0.0
      %414 = vmatpush1.msra.mxu0 %v362
      %415 = vmatprep.subr.mxu0 0.0
      %416 = vmatpush2.msra.mxu0 0.0
      %417 = vmatprep.subr.mxu0 0.0
      %418 = vmatpush2.msra.mxu0 0.0
      %419 = vmatprep.subr.mxu0 0.0
      %420 = vmatpush2.msra.mxu0 0.0
      %421 = vmatprep.subr.mxu0 0.0
      %422 = vmatpush2.msra.mxu0 0.0
      %423 = vmatprep.subr.mxu0 0.0
      %424 = vmatpush2.msra.mxu0 0.0
      %425 = vmatprep.subr.mxu0 0.0
      %426 = vmatpush2.msra.mxu0 0.0
      %427 = vmatprep.subr.mxu0 0.0
      %428 = vmatpush2.msra.mxu0 0.0
      %429 = vmatprep.subr.mxu0 0.0
      %430 = vmatpush2.msra.mxu0 0.0
      %431 = vmatprep.subr.mxu0 0.0
      %432 = vmatpush2.msra.mxu0 0.0
      %433 = vmatprep.subr.mxu0 0.0
      %434 = vmatpush2.msra.mxu0 0.0
      %435 = vmatprep.subr.mxu0 0.0
      %436 = vmatpush2.msra.mxu0 0.0
      %437 = vmatprep.subr.mxu0 0.0
      %438 = vmatpush2.msra.mxu0 0.0
      %439 = vmatprep.subr.mxu0 0.0
      %440 = vmatpush2.msra.mxu0 0.0
      %441 = vmatprep.subr.mxu0 0.0
      %442 = vmatpush2.msra.mxu0 0.0
      %443 = vmatprep.subr.mxu0 0.0
      %444 = vmatpush2.msra.mxu0 0.0
      %445 = vmatprep.subr.mxu0 0.0
      %446 = vmatpush2.msra.mxu0 0.0
      %447 = vmatprep.mubr.f32.mxu0 0.0
      %448 = vmatmul.mubr.f32.gmra.mxu0 %v372
      %v449 = vpop.f32.mrf.mxu0
      %v450 = vadd.f32 %v368, %v449
      %v451 = vpop.f32.mrf.mxu0
      %452 = vmatprep.mubr.f32.mxu0 0.0
      %453 = vmatmul.mubr.f32.gmra.mxu0 %v375
      %v454 = vpop.f32.mrf.mxu0
      %v455 = vadd.f32 %v368, %v454
      %v456 = vpop.f32.mrf.mxu0
      %457 = vmatprep.mubr.f32.mxu0 0.0
      %458 = vmatmul.mubr.f32.gmra.mxu0 %v378
      %v459 = vpop.f32.mrf.mxu0
      %v460 = vadd.f32 %v368, %v459
      %v461 = vpop.f32.mrf.mxu0
      %462 = vmatprep.mubr.f32.mxu0 0.0
      %463 = vmatmul.mubr.f32.gmra.mxu0 %v381
      %v464 = vpop.f32.mrf.mxu0
      %v465 = vadd.f32 %v368, %v464
      %v466 = vpop.f32.mrf.mxu0
      %467 = vdwg.mxu0
      %v468 = vxor.u32 %v450, 2147483648
      %v469 = vxor.u32 %v455, 2147483648
      %v470 = vxor.u32 %v460, 2147483648
      %v471 = vxor.u32 %v465, 2147483648
      %v472 = vmul.f32 %v468, 1.442695
      %v473 = vpow.pop %v472
      %v474 = vmul.f32 %v469, 1.442695
      %v475 = vpow.pop %v474
      %v476 = vmul.f32 %v470, 1.442695
      %v477 = vpow.pop %v476
      %v478 = vmul.f32 %v471, 1.442695
      %v479 = vpow.pop %v478
      %v480 = vadd.f32 %v473, 1.0
      %v481 = vadd.f32 %v475, 1.0
      %v482 = vadd.f32 %v477, 1.0
      %v483 = vadd.f32 %v479, 1.0
      %v484 = vrcp.pop %v480
      %v485 = vmul.f32 1.0, %v484
      %v486 = vrcp.pop %v481
      %v487 = vmul.f32 1.0, %v486
      %v488 = vrcp.pop %v482
      %v489 = vmul.f32 1.0, %v488
      %v490 = vrcp.pop %v483
      %v491 = vmul.f32 1.0, %v490
      %v492 = vmul.f32 %v450, %v485
      %v493 = vmul.f32 %v455, %v487
      %v494 = vmul.f32 %v460, %v489
      %v495 = vmul.f32 %v465, %v491
      %v496 = vld [vmem:[%s5] sm:$0xff]
      %v497 = vld [vmem:[%s5 + $0x8] sm:$0xff]
      %v498 = vld [vmem:[%s5 + $0x10] sm:$0xff]
      %v499 = vld [vmem:[%s5 + $0x18] sm:$0xff]
      %v500 = vld [vmem:[%s6] sm:$0x1]
      %v502 = vlaneseq
      %v503 = vshrl.u32 %v502, 7
      %v504 = vsub.s32 0, %v503
      %v505 = vrot.slane %v500, %v504
      %vm507 = vcmask 261120
      %v509 = vsel %vm507, %v492, 0
      %v512 = vsel %vm507, %v493, 0
      %v515 = vsel %vm507, %v494, 0
      %v518 = vsel %vm507, %v495, 0
      %520 = vmatprep.subr.mxu0 0.0
      %521 = vmatpush1.msra.mxu0 0.0
      %522 = vmatprep.subr.mxu0 0.0
      %523 = vmatpush1.msra.mxu0 0.0
      %524 = vmatprep.subr.mxu0 0.0
      %525 = vmatpush1.msra.mxu0 0.0
      %526 = vmatprep.subr.mxu0 0.0
      %527 = vmatpush1.msra.mxu0 0.0
      %528 = vmatprep.subr.mxu0 0.0
      %529 = vmatpush1.msra.mxu0 0.0
      %530 = vmatprep.subr.mxu0 0.0
      %531 = vmatpush1.msra.mxu0 0.0
      %532 = vmatprep.subr.mxu0 0.0
      %533 = vmatpush1.msra.mxu0 0.0
      %534 = vmatprep.subr.mxu0 0.0
      %535 = vmatpush1.msra.mxu0 0.0
      %536 = vmatprep.subr.mxu0 0.0
      %537 = vmatpush1.msra.mxu0 0.0
      %538 = vmatprep.subr.mxu0 0.0
      %539 = vmatpush1.msra.mxu0 0.0
      %540 = vmatprep.subr.mxu0 0.0
      %541 = vmatpush1.msra.mxu0 0.0
      %542 = vmatprep.subr.mxu0 0.0
      %543 = vmatpush1.msra.mxu0 0.0
      %544 = vmatprep.subr.mxu0 0.0
      %545 = vmatpush1.msra.mxu0 %v499
      %546 = vmatprep.subr.mxu0 0.0
      %547 = vmatpush1.msra.mxu0 %v498
      %548 = vmatprep.subr.mxu0 0.0
      %549 = vmatpush1.msra.mxu0 %v497
      %550 = vmatprep.subr.mxu0 0.0
      %551 = vmatpush1.msra.mxu0 %v496
      %552 = vmatprep.subr.mxu0 0.0
      %553 = vmatpush2.msra.mxu0 0.0
      %554 = vmatprep.subr.mxu0 0.0
      %555 = vmatpush2.msra.mxu0 0.0
      %556 = vmatprep.subr.mxu0 0.0
      %557 = vmatpush2.msra.mxu0 0.0
      %558 = vmatprep.subr.mxu0 0.0
      %559 = vmatpush2.msra.mxu0 0.0
      %560 = vmatprep.subr.mxu0 0.0
      %561 = vmatpush2.msra.mxu0 0.0
      %562 = vmatprep.subr.mxu0 0.0
      %563 = vmatpush2.msra.mxu0 0.0
      %564 = vmatprep.subr.mxu0 0.0
      %565 = vmatpush2.msra.mxu0 0.0
      %566 = vmatprep.subr.mxu0 0.0
      %567 = vmatpush2.msra.mxu0 0.0
      %568 = vmatprep.subr.mxu0 0.0
      %569 = vmatpush2.msra.mxu0 0.0
      %570 = vmatprep.subr.mxu0 0.0
      %571 = vmatpush2.msra.mxu0 0.0
      %572 = vmatprep.subr.mxu0 0.0
      %573 = vmatpush2.msra.mxu0 0.0
      %574 = vmatprep.subr.mxu0 0.0
      %575 = vmatpush2.msra.mxu0 0.0
      %576 = vmatprep.subr.mxu0 0.0
      %577 = vmatpush2.msra.mxu0 0.0
      %578 = vmatprep.subr.mxu0 0.0
      %579 = vmatpush2.msra.mxu0 0.0
      %580 = vmatprep.subr.mxu0 0.0
      %581 = vmatpush2.msra.mxu0 0.0
      %582 = vmatprep.subr.mxu0 0.0
      %583 = vmatpush2.msra.mxu0 0.0
      %584 = vmatprep.mubr.f32.mxu0 0.0
      %585 = vmatmul.mubr.f32.gmra.mxu0 %v509
      %v586 = vpop.f32.mrf.mxu0
      %v587 = vadd.f32 %v505, %v586
      %v588 = vpop.f32.mrf.mxu0
      %589 = vmatprep.mubr.f32.mxu0 0.0
      %590 = vmatmul.mubr.f32.gmra.mxu0 %v512
      %v591 = vpop.f32.mrf.mxu0
      %v592 = vadd.f32 %v505, %v591
      %v593 = vpop.f32.mrf.mxu0
      %594 = vmatprep.mubr.f32.mxu0 0.0
      %595 = vmatmul.mubr.f32.gmra.mxu0 %v515
      %v596 = vpop.f32.mrf.mxu0
      %v597 = vadd.f32 %v505, %v596
      %v598 = vpop.f32.mrf.mxu0
      %599 = vmatprep.mubr.f32.mxu0 0.0
      %600 = vmatmul.mubr.f32.gmra.mxu0 %v518
      %v601 = vpop.f32.mrf.mxu0
      %v602 = vadd.f32 %v505, %v601
      %v603 = vpop.f32.mrf.mxu0
      %604 = vdwg.mxu0
      %v605 = vld [vmem:[%s7] sm:$0x1]
      %v606 = vld [vmem:[%s8] sm:$0x1]
      %v607 = vsel %vm507, %v587, 0.0
      %608 = vadd.xlane.f32.xlu0 %v607
      %v609 = vpop.xlane.xlu0 %608
      %v610 = vsel %vm507, %v592, 0.0
      %611 = vadd.xlane.f32.xlu0 %v610
      %v612 = vpop.xlane.xlu0 %611
      %v613 = vsel %vm507, %v597, 0.0
      %614 = vadd.xlane.f32.xlu0 %v613
      %v615 = vpop.xlane.xlu0 %614
      %v616 = vsel %vm507, %v602, 0.0
      %617 = vadd.xlane.f32.xlu0 %v616
      %v618 = vpop.xlane.xlu0 %617
      %v619 = vrcp.pop 32.0
      %v620 = vmul.f32 %v609, %v619
      %v621 = vmul.f32 %v612, %v619
      %v622 = vmul.f32 %v615, %v619
      %v623 = vmul.f32 %v618, %v619
      %v624 = vsub.f32 %v587, %v620
      %v625 = vsub.f32 %v592, %v621
      %v626 = vsub.f32 %v597, %v622
      %v627 = vsub.f32 %v602, %v623
      %v628 = vmul.f32 %v624, %v624
      %v629 = vmul.f32 %v625, %v625
      %v630 = vmul.f32 %v626, %v626
      %v631 = vmul.f32 %v627, %v627
      %v632 = vsel %vm507, %v628, 0.0
      %633 = vadd.xlane.f32.xlu0 %v632
      %v634 = vpop.xlane.xlu0 %633
      %v635 = vsel %vm507, %v629, 0.0
      %636 = vadd.xlane.f32.xlu0 %v635
      %v637 = vpop.xlane.xlu0 %636
      %v638 = vsel %vm507, %v630, 0.0
      %639 = vadd.xlane.f32.xlu0 %v638
      %v640 = vpop.xlane.xlu0 %639
      %v641 = vsel %vm507, %v631, 0.0
      %642 = vadd.xlane.f32.xlu0 %v641
      %v643 = vpop.xlane.xlu0 %642
      %v644 = vmul.f32 %v634, %v619
      %v645 = vmul.f32 %v637, %v619
      %v646 = vmul.f32 %v640, %v619
      %v647 = vmul.f32 %v643, %v619
      %v648 = vadd.f32 %v644, 1e-05
      %v649 = vadd.f32 %v645, 1e-05
      %v650 = vadd.f32 %v646, 1e-05
      %v651 = vadd.f32 %v647, 1e-05
      %v652 = vrsqrt.pop %v648
      %v653 = vrsqrt.pop %v649
      %v654 = vrsqrt.pop %v650
      %v655 = vrsqrt.pop %v651
      %v656 = vmul.f32 %v624, %v652
      %v657 = vmul.f32 %v625, %v653
      %v658 = vmul.f32 %v626, %v654
      %v659 = vmul.f32 %v627, %v655
      %v661 = vlaneseq
      %v662 = vshrl.u32 %v661, 7
      %v663 = vsub.s32 0, %v662
      %v664 = vrot.slane %v605, %v663
      %v666 = vmul.f32 %v656, %v664
      %v667 = vmul.f32 %v657, %v664
      %v668 = vmul.f32 %v658, %v664
      %v669 = vmul.f32 %v659, %v664
      %v671 = vlaneseq
      %v672 = vshrl.u32 %v671, 7
      %v673 = vsub.s32 0, %v672
      %v674 = vrot.slane %v606, %v673
      %v676 = vadd.f32 %v666, %v674
      %v677 = vadd.f32 %v667, %v674
      %v678 = vadd.f32 %v668, %v674
      %v679 = vadd.f32 %v669, %v674
      %v680 = vlaneseq
      %v681 = vand.u32 %v680, 127
      %v682 = vld [vmem:[%s350] sm:$0xff]
      %v683 = vld [vmem:[%s350 + $0x8] sm:$0xff]
      %v684 = vld [vmem:[%s350 + $0x10] sm:$0xff]
      %v685 = vld [vmem:[%s350 + $0x18] sm:$0xff]
      %686 = vset.pattern.permute.xlu0 0
      %687 = vperm.xlu0 %686, %v682
      %v688 = vpop.permute.xlu0 %687
      %689 = vset.pattern.permute.xlu0 0
      %690 = vperm.xlu0 %689, %v683
      %v691 = vpop.permute.xlu0 %690
      %692 = vset.pattern.permute.xlu0 0
      %693 = vperm.xlu0 %692, %v684
      %v694 = vpop.permute.xlu0 %693
      %695 = vset.pattern.permute.xlu0 0
      %696 = vperm.xlu0 %695, %v685
      %v697 = vpop.permute.xlu0 %696
      %vm698 = vcmp.eq.s32.totalorder %v688, %v681
      %vm699 = vcmp.eq.s32.totalorder %v691, %v681
      %vm700 = vcmp.eq.s32.totalorder %v694, %v681
      %vm701 = vcmp.eq.s32.totalorder %v697, %v681
      %v702 = vsel %vm698, 1, 0
      %v703 = vsel %vm699, 1, 0
      %v704 = vsel %vm700, 1, 0
      %v705 = vsel %vm701, 1, 0
      %v706 = vcvt.s32.f32 %v702
      %v707 = vcvt.s32.f32 %v703
      %v708 = vcvt.s32.f32 %v704
      %v709 = vcvt.s32.f32 %v705
      %v710 = vld [vmem:[%s2] sm:$0x3]
      %vm711 = vcmask 15360
      %v713 = vsel %vm711, %v706, 0
      %v716 = vsel %vm711, %v707, 0
      %v719 = vsel %vm711, %v708, 0
      %v722 = vsel %vm711, %v709, 0
      %vm724 = vcmask 1041408
      %v726 = vsel %vm724, %v710, 0
      %728 = vmatprep.subr.mxu0 0.0
      %729 = vmatpush1.msra.mxu0 0.0
      %730 = vmatprep.subr.mxu0 0.0
      %731 = vmatpush1.msra.mxu0 0.0
      %732 = vmatprep.subr.mxu0 0.0
      %733 = vmatpush1.msra.mxu0 0.0
      %734 = vmatprep.subr.mxu0 0.0
      %735 = vmatpush1.msra.mxu0 0.0
      %736 = vmatprep.subr.mxu0 0.0
      %737 = vmatpush1.msra.mxu0 0.0
      %738 = vmatprep.subr.mxu0 0.0
      %739 = vmatpush1.msra.mxu0 0.0
      %740 = vmatprep.subr.mxu0 0.0
      %741 = vmatpush1.msra.mxu0 0.0
      %742 = vmatprep.subr.mxu0 0.0
      %743 = vmatpush1.msra.mxu0 0.0
      %744 = vmatprep.subr.mxu0 0.0
      %745 = vmatpush1.msra.mxu0 0.0
      %746 = vmatprep.subr.mxu0 0.0
      %747 = vmatpush1.msra.mxu0 0.0
      %748 = vmatprep.subr.mxu0 0.0
      %749 = vmatpush1.msra.mxu0 0.0
      %750 = vmatprep.subr.mxu0 0.0
      %751 = vmatpush1.msra.mxu0 0.0
      %752 = vmatprep.subr.mxu0 0.0
      %753 = vmatpush1.msra.mxu0 0.0
      %754 = vmatprep.subr.mxu0 0.0
      %755 = vmatpush1.msra.mxu0 0.0
      %756 = vmatprep.subr.mxu0 0.0
      %757 = vmatpush1.msra.mxu0 0.0
      %758 = vmatprep.subr.mxu0 0.0
      %759 = vmatpush1.msra.mxu0 %v726
      %760 = vmatprep.subr.mxu0 0.0
      %761 = vmatpush2.msra.mxu0 0.0
      %762 = vmatprep.subr.mxu0 0.0
      %763 = vmatpush2.msra.mxu0 0.0
      %764 = vmatprep.subr.mxu0 0.0
      %765 = vmatpush2.msra.mxu0 0.0
      %766 = vmatprep.subr.mxu0 0.0
      %767 = vmatpush2.msra.mxu0 0.0
      %768 = vmatprep.subr.mxu0 0.0
      %769 = vmatpush2.msra.mxu0 0.0
      %770 = vmatprep.subr.mxu0 0.0
      %771 = vmatpush2.msra.mxu0 0.0
      %772 = vmatprep.subr.mxu0 0.0
      %773 = vmatpush2.msra.mxu0 0.0
      %774 = vmatprep.subr.mxu0 0.0
      %775 = vmatpush2.msra.mxu0 0.0
      %776 = vmatprep.subr.mxu0 0.0
      %777 = vmatpush2.msra.mxu0 0.0
      %778 = vmatprep.subr.mxu0 0.0
      %779 = vmatpush2.msra.mxu0 0.0
      %780 = vmatprep.subr.mxu0 0.0
      %781 = vmatpush2.msra.mxu0 0.0
      %782 = vmatprep.subr.mxu0 0.0
      %783 = vmatpush2.msra.mxu0 0.0
      %784 = vmatprep.subr.mxu0 0.0
      %785 = vmatpush2.msra.mxu0 0.0
      %786 = vmatprep.subr.mxu0 0.0
      %787 = vmatpush2.msra.mxu0 0.0
      %788 = vmatprep.subr.mxu0 0.0
      %789 = vmatpush2.msra.mxu0 0.0
      %790 = vmatprep.subr.mxu0 0.0
      %791 = vmatpush2.msra.mxu0 0.0
      %792 = vmatprep.mubr.f32.mxu0 0.0
      %793 = vmatmul.mubr.f32.gmra.mxu0 %v713
      %v794 = vpop.f32.mrf.mxu0
      %v795 = vadd.f32 0.0, %v794
      %v796 = vpop.f32.mrf.mxu0
      %797 = vmatprep.mubr.f32.mxu0 0.0
      %798 = vmatmul.mubr.f32.gmra.mxu0 %v716
      %v799 = vpop.f32.mrf.mxu0
      %v800 = vadd.f32 0.0, %v799
      %v801 = vpop.f32.mrf.mxu0
      %802 = vmatprep.mubr.f32.mxu0 0.0
      %803 = vmatmul.mubr.f32.gmra.mxu0 %v719
      %v804 = vpop.f32.mrf.mxu0
      %v805 = vadd.f32 0.0, %v804
      %v806 = vpop.f32.mrf.mxu0
      %807 = vmatprep.mubr.f32.mxu0 0.0
      %808 = vmatmul.mubr.f32.gmra.mxu0 %v722
      %v809 = vpop.f32.mrf.mxu0
      %v810 = vadd.f32 0.0, %v809
      %v811 = vpop.f32.mrf.mxu0
      %812 = vdwg.mxu0
      %v813 = vadd.f32 %v676, %v795
      %v814 = vadd.f32 %v677, %v800
      %v815 = vadd.f32 %v678, %v805
      %v816 = vadd.f32 %v679, %v810
      %817 = vst.msk [vmem:[%s356] sm:$0xff] %vm507, %v813
      %818 = vst.msk [vmem:[%s356 + $0x8] sm:$0xff] %vm507, %v814
      %819 = vst.msk [vmem:[%s356 + $0x10] sm:$0xff] %vm507, %v815
      %820 = vst.msk [vmem:[%s356 + $0x18] sm:$0xff] %vm507, %v816
      %s821 = smul.u32 4, %s20
      %p822 = scmp.lt.s32.totalorder %s821, 7
      %s823 = scalar_select %p822, %s821, 7
      %s824 = smul.addr %s823, 8
      %s825 = scalar_lea.vmem %s9, %s824
      // Predicated region
      $region57: #{tpu_custom_call.1} parent=55 // pred_check
        %p826 = pneg %p237
      $region58: #{tpu_custom_call.1} parent=55 // pred_check_branch
        %828 = sbr.rel (%p826) target = $region60
      $region59: #{tpu_custom_call.1} parent=55 // pred_region
        %s829 = smul.u32 4, %s20
      $region60: #{tpu_custom_call.1} parent=55 // pred_fallthru
        _
    $region56: #{tpu_custom_call.1} parent=5 // pred_fallthru
      _
    %p830 = scmp.le.s32.totalorder 2, %s15
    // Predicated region
    $region61: #{tpu_custom_call.1} parent=5 // pred_check
      %p831 = pneg %p830
    $region62: #{tpu_custom_call.1} parent=5 // pred_check_branch
      %833 = sbr.rel (%p831) target = $region64
    $region63: #{tpu_custom_call.1} parent=5 // pred_region
      %s834 = ssub.s32 %s15, 2
      // Predicated region
      $region65: #{tpu_custom_call.1} parent=63 // pred_check
        %p835 = pneg %p243
      $region66: #{tpu_custom_call.1} parent=63 // pred_check_branch
        %837 = sbr.rel (%p835) target = $region68
      $region67: #{tpu_custom_call.1} parent=63 // pred_region
        %s838 = smul.u32 4, %s21
        %p839 = scmp.lt.s32.totalorder %s838, 7
        %s840 = scalar_select %p839, %s838, 7
        %s841 = smul.addr %s840, 8
        %s842 = scalar_lea.vmem %s9, %s841
      $region68: #{tpu_custom_call.1} parent=63 // pred_fallthru
        _
    $region64: #{tpu_custom_call.1} parent=5 // pred_fallthru
      _
  $region6: #{tpu_custom_call.1} parent=0 // loop_footer
    %s19 = sadd.s32 1, %s15
  $region7: #{tpu_custom_call.1} parent=0 // loop_footer_branch
    %14 = sbr.rel target = $region3
  $region8: #{tpu_custom_call.1} parent=0 // loop_exit
    _

</llo_original>
